<compile_context>
chip_gen: v7x
topology: tpu7x:2x2x1
jax: 0.10.0
libtpu: 0.0.40
codegen_flags: <defaults>
</compile_context>

<pallas_src>
import functools

import jax
import jax.numpy as jnp
from jax import lax
from jax.experimental import pallas as pl
from jax.experimental.pallas import tpu as pltpu


@functools.lru_cache(maxsize=None)
def _vmem_limit_bytes():
    """Per-generation scoped-VMEM budget (~60% on v7x's 64 MiB, ~75% on 128 MiB chips)."""
    cap = None
    try:
        info = pltpu.get_tpu_info()
        cap = getattr(info, "vmem_capacity_bytes", None)
    except Exception:
        cap = None
    if not cap:
        cap = 64 * 1024 * 1024          # conservative fallback (safe on every generation)
    frac = 0.60 if cap <= 64 * 1024 * 1024 else 0.75
    return int(cap * frac)


# ---------------------------------------------------------------------------
# Tiled linear:  y = x @ W (+ b)
# ---------------------------------------------------------------------------

def _linear_resident_kernel(x_ref, w_ref, o_ref):
    x = x_ref[...].astype(w_ref.dtype)                 # in-kernel activation cast
    o_ref[...] = jnp.dot(x, w_ref[...],
                         preferred_element_type=jnp.float32).astype(o_ref.dtype)


def _linear_resident_bias_kernel(x_ref, w_ref, b_ref, o_ref):
    x = x_ref[...].astype(w_ref.dtype)
    acc = jnp.dot(x, w_ref[...], preferred_element_type=jnp.float32)
    o_ref[...] = (acc + b_ref[...].astype(jnp.float32)).astype(o_ref.dtype)


def _linear_ktiled_kernel(x_ref, w_ref, o_ref, acc_ref):
    @pl.when(pl.program_id(2) == 0)
    def _():
        acc_ref[...] = jnp.zeros_like(acc_ref)
    acc_ref[...] += jnp.dot(x_ref[...].astype(w_ref.dtype), w_ref[...],
                            preferred_element_type=jnp.float32)
    @pl.when(pl.program_id(2) == pl.num_programs(2) - 1)
    def _():
        o_ref[...] = acc_ref[...].astype(o_ref.dtype)


def _linear_ktiled_bias_kernel(x_ref, w_ref, b_ref, o_ref, acc_ref):
    @pl.when(pl.program_id(2) == 0)
    def _():
        acc_ref[...] = jnp.zeros_like(acc_ref)
    acc_ref[...] += jnp.dot(x_ref[...].astype(w_ref.dtype), w_ref[...],
                            preferred_element_type=jnp.float32)
    @pl.when(pl.program_id(2) == pl.num_programs(2) - 1)
    def _():
        o_ref[...] = (acc_ref[...] + b_ref[...].astype(jnp.float32)).astype(o_ref.dtype)


def linear(x2d, w, b=None, *, block_m=512, block_n=256, block_k=512, out_dtype=None):
    """y = x2d @ w (+ b), f32 accumulation, in-kernel activation cast to w.dtype.

    Resident-weight path (default when it fits VMEM): grid is (Nout, M) with Nout
    outermost, so the W block index only changes on the outer axis and W stays in
    VMEM while activation tiles stream.  Fallback: K-tiled accumulator path.
    """
    M, K = x2d.shape
    K2, Nout = w.shape
    assert K == K2
    out_dtype = out_dtype if out_dtype is not None else w.dtype
    vmem_limit = _vmem_limit_bytes()

    bm = min(block_m, M)
    bn = min(block_n, Nout)

    xsz = jnp.dtype(x2d.dtype).itemsize
    wsz = jnp.dtype(w.dtype).itemsize
    osz = jnp.dtype(out_dtype).itemsize
    resident_bytes = (2 * bm * K * xsz       # activation tile, double-buffered
                      + 2 * K * bn * wsz     # weight tile (pessimistic: 2 buffers)
                      + 2 * bm * bn * osz)   # output tile, double-buffered
    use_resident = resident_bytes <= int(0.8 * vmem_limit)

    operands = [x2d, w]
    if b is not None:
        operands.append(b.reshape(1, Nout))

    if use_resident:
        grid = (pl.cdiv(Nout, bn), pl.cdiv(M, bm))           # Nout outer, M inner
        in_specs = [
            pl.BlockSpec((bm, K), lambda j, i: (i, 0)),
            pl.BlockSpec((K, bn), lambda j, i: (0, j)),       # resident across M sweep
        ]
        if b is not None:
            in_specs.append(pl.BlockSpec((1, bn), lambda j, i: (0, j)))
            kernel = _linear_resident_bias_kernel
        else:
            kernel = _linear_resident_kernel
        out_specs = pl.BlockSpec((bm, bn), lambda j, i: (i, j))
        scratch = []
        semantics = ("parallel", "parallel")
    else:
        # Only tile K when it divides exactly: padding a reduction dim would feed
        # garbage into the accumulator.
        bk = block_k if (K > block_k and K % block_k == 0) else K
        grid = (pl.cdiv(Nout, bn), pl.cdiv(M, bm), K // bk)
        in_specs = [
            pl.BlockSpec((bm, bk), lambda j, i, k: (i, k)),
            pl.BlockSpec((bk, bn), lambda j, i, k: (k, j)),
        ]
        if b is not None:
            in_specs.append(pl.BlockSpec((1, bn), lambda j, i, k: (0, j)))
            kernel = _linear_ktiled_bias_kernel
        else:
            kernel = _linear_ktiled_kernel
        out_specs = pl.BlockSpec((bm, bn), lambda j, i, k: (i, j))
        scratch = [pltpu.VMEM((bm, bn), jnp.float32)]
        semantics = ("parallel", "parallel", "arbitrary")

    return pl.pallas_call(
        kernel,
        out_shape=jax.ShapeDtypeStruct((M, Nout), out_dtype),
        grid_spec=pltpu.PrefetchScalarGridSpec(
            num_scalar_prefetch=0,
            grid=grid,
            in_specs=in_specs,
            out_specs=out_specs,
            scratch_shapes=scratch,
        ),
        compiler_params=pltpu.CompilerParams(
            dimension_semantics=semantics,
            vmem_limit_bytes=vmem_limit),
    )(*operands)


# ---------------------------------------------------------------------------
# Fused attention core:  q-proj -> flash cross-attention -> output projection
# ---------------------------------------------------------------------------

def _fused_attn_kernel(x1_ref, kv_ref, wq_ref, pw_ref, pb_ref, o_ref,
                       q_scr, m_scr, l_scr, acc_scr,
                       *, num_heads, head_dim, scale):
    """One (batch, q-tile, kv-tile) grid point; all heads handled per step.

    x1_ref : (1, bq, C)    raw q-source rows (cast to MXU dtype in-kernel)
    kv_ref : (1, bkv, 2C)  keys in [..., :C], values in [..., C:]
    wq_ref : (C, C)        resident q projection weight
    pw_ref : (C, C), pb_ref: (1, C)   resident output projection
    o_ref  : (1, bq, C)    final (projected) output, written once, lane-dense
    Scratch: q (bq, C) in MXU dtype; running max / sum (bq, H) f32; acc (bq, C) f32.
    Softmax math stays float32 regardless of the MXU operand dtype.
    """
    C = num_heads * head_dim
    kv_step = pl.program_id(2)

    @pl.when(kv_step == 0)
    def _():
        # Fused q projection: q never round-trips through HBM.  Pre-scaled so the
        # (bq, bkv) score matrix needs no extra multiply.
        xq = x1_ref[0].astype(wq_ref.dtype)
        q = jnp.dot(xq, wq_ref[...], preferred_element_type=jnp.float32) * scale
        q_scr[...] = q.astype(q_scr.dtype)
        m_scr[...] = jnp.full_like(m_scr, -jnp.inf)
        l_scr[...] = jnp.zeros_like(l_scr)
        acc_scr[...] = jnp.zeros_like(acc_scr)

    # TODO(synk): for many heads with head_dim % 128 == 0, switch this static unroll to a
    # lax.fori_loop (pl.multiple_of on the lane offset) to bound the live range of the
    # per-head (bq, bkv) f32 score temporaries under v7x's 64 MiB VMEM.
    for h in range(num_heads):
        lo = h * head_dim
        qh = q_scr[:, pl.ds(lo, head_dim)]
        kh = kv_ref[0, :, pl.ds(lo, head_dim)]
        vh = kv_ref[0, :, pl.ds(C + lo, head_dim)]
        # Contract the last dims directly (no materialized K^T in HBM).
        # TODO(synk): verify with pl.lower_as_mlir that this doesn't insert a per-head
        # XLU transpose; if it does, emit K pre-transposed from the kv projection.
        s = lax.dot_general(qh, kh, (((1,), (1,)), ((), ())),
                            preferred_element_type=jnp.float32)           # (bq, bkv)
        m_prev = m_scr[:, pl.ds(h, 1)]                                     # (bq, 1)
        l_prev = l_scr[:, pl.ds(h, 1)]
        m_new = jnp.maximum(m_prev, jnp.max(s, axis=-1, keepdims=True))
        alpha = jnp.exp(m_prev - m_new)
        p = jnp.exp(s - m_new)
        l_new = alpha * l_prev + jnp.sum(p, axis=-1, keepdims=True)
        pv = jnp.dot(p.astype(vh.dtype), vh, preferred_element_type=jnp.float32)
        acc_scr[:, pl.ds(lo, head_dim)] = (alpha * acc_scr[:, pl.ds(lo, head_dim)] + pv)
        m_scr[:, pl.ds(h, 1)] = m_new
        l_scr[:, pl.ds(h, 1)] = l_new

    @pl.when(kv_step == pl.num_programs(2) - 1)
    def _():
        # Normalize per head in place (exact reciprocal; epilogue-only cost), then the
        # fused output projection and a single lane-dense (bq, C) store.
        inv_l = pl.reciprocal(l_scr[...], approx=False)                    # (bq, H)
        for h in range(num_heads):
            lo = h * head_dim
            acc_scr[:, pl.ds(lo, head_dim)] = (acc_scr[:, pl.ds(lo, head_dim)]
                                               * inv_l[:, h:h + 1])
        attn_out = acc_scr[...].astype(pw_ref.dtype)                       # (bq, C)
        proj = jnp.dot(attn_out, pw_ref[...], preferred_element_type=jnp.float32)
        proj = proj + pb_ref[...].astype(jnp.float32)
        o_ref[0] = proj.astype(o_ref.dtype)


def _pick_kv_block(N, block_kv):
    """Largest 128-multiple divisor of N not exceeding block_kv (or N if it fits)."""
    if block_kv is None or N <= block_kv:
        return N
    b = (block_kv // 128) * 128
    while b >= 128:
        if N % b == 0:
            return b
        b -= 128
    # TODO(synk): masked KV tails for key lengths with no 128-multiple divisor.
    return N


def fused_cross_attention(x1, kv, w_q, proj_w, proj_b, num_heads, scale, *,
                          block_q=256, block_kv=1024, out_dtype=None):
    """proj( softmax((x1 @ w_q)_h k_h^T * scale) v_h ) + b, all heads packed per step.

    Grid (batch, q-tiles, kv-tiles); kv axis is the "arbitrary" reduction carrying the
    online-softmax state in VMEM scratch, so VMEM stays bounded for long key lengths.
    When the whole KV fits, bkv == N (single kv step) and the KV block index only
    depends on the batch axis, so it is not re-DMA'd across q tiles.
    """
    B1, N1, C = x1.shape
    B, N, C2 = kv.shape
    assert B == B1 and C2 == 2 * C and C % num_heads == 0
    head_dim = C // num_heads
    out_dtype = out_dtype if out_dtype is not None else x1.dtype
    vmem_limit = _vmem_limit_bytes()

    bq = min(block_q, N1)
    bkv = _pick_kv_block(N, block_kv)

    kernel = functools.partial(_fused_attn_kernel, num_heads=num_heads,
                               head_dim=head_dim, scale=scale)
    grid = (B, pl.cdiv(N1, bq), N // bkv)

    return pl.pallas_call(
        kernel,
        out_shape=jax.ShapeDtypeStruct((B1, N1, C), out_dtype),
        grid_spec=pltpu.PrefetchScalarGridSpec(
            num_scalar_prefetch=0,
            grid=grid,
            in_specs=[
                pl.BlockSpec((1, bq, C), lambda b, i, j: (b, i, 0)),        # x1 (q source)
                pl.BlockSpec((1, bkv, 2 * C), lambda b, i, j: (b, j, 0)),   # k|v tile
                pl.BlockSpec((C, C), lambda b, i, j: (0, 0)),               # w_q (resident)
                pl.BlockSpec((C, C), lambda b, i, j: (0, 0)),               # proj_w (resident)
                pl.BlockSpec((1, C), lambda b, i, j: (0, 0)),               # proj_b (resident)
            ],
            out_specs=pl.BlockSpec((1, bq, C), lambda b, i, j: (b, i, 0)),
            scratch_shapes=[
                pltpu.VMEM((bq, C), w_q.dtype),             # q (pre-scaled, MXU dtype)
                pltpu.VMEM((bq, num_heads), jnp.float32),   # running max per head
                pltpu.VMEM((bq, num_heads), jnp.float32),   # running sum per head
                pltpu.VMEM((bq, C), jnp.float32),           # output accumulator
            ],
        ),
        compiler_params=pltpu.CompilerParams(
            dimension_semantics=("parallel", "parallel", "arbitrary"),
            vmem_limit_bytes=vmem_limit),
    )(x1, kv, w_q, proj_w, proj_b.reshape(1, C))


# ---------------------------------------------------------------------------
# Module wrapper
# ---------------------------------------------------------------------------

def init_cross_attention_params(key, dim, num_heads):
    k1, k2, k3 = jax.random.split(key, 3)
    # Stored as (in_features, out_features) == torch weight transposed.
    qkv_w = jax.random.normal(k1, (dim, 3 * dim), jnp.float32) * 0.02
    proj_w = jax.random.normal(k2, (dim, dim), jnp.float32) * 0.02
    proj_b = jax.random.normal(k3, (dim,), jnp.float32) * 0.02
    return dict(qkv_w=qkv_w, proj_w=proj_w, proj_b=proj_b,
                num_heads=num_heads, dim=dim)


def cross_attention_forward(params, x, x1, *, compute_dtype=None,
                            block_m=512, block_n=256, block_q=256, block_kv=1024):
    """x: (B, N, C) provides k/v, x1: (B, N1, C) provides q.  Returns (B, N1, C) in x1.dtype.

    compute_dtype: optional MXU operand dtype.  bf16 is worthwhile on all generations
    (v5e's MXU is bf16-native too); softmax math and all accumulation stay in float32.
    Activations are never pre-cast in the wrapper -- tiles are cast inside the kernels.
    """
    B, N, C = x.shape
    B1, N1, C1 = x1.shape
    assert C1 == C
    assert B1 == B, "q (from x1) and k/v (from x) are paired batch-wise"
    H = params["num_heads"]
    assert C % H == 0
    hd = C // H
    scale = hd ** (-0.5)

    # Weights cast once (tiny, resident in VMEM); in a real model store them in
    # compute_dtype directly.
    cdtype = compute_dtype if compute_dtype is not None else x.dtype
    qkv_w = params["qkv_w"].astype(cdtype)
    proj_w = params["proj_w"].astype(cdtype)
    proj_b = params["proj_b"]                      # added in f32 in the attention epilogue

    # The torch module computes qkv(x) and qkv(x1) in full and then discards q(x) and
    # k/v(x1).  Project only what is used: q(x1) and the output projection are fused
    # into the attention kernel; only kv(x) is materialized (reused across all q tiles).
    w_q = qkv_w[:, :C]                             # (C, C)
    w_kv = qkv_w[:, C:]                            # (C, 2C): k columns first, then v

    kv = linear(x.reshape(B * N, C), w_kv, out_dtype=cdtype,
                block_m=block_m, block_n=block_n).reshape(B, N, 2 * C)

    # attn_drop / proj_drop are identity (p=0.0, eval mode).
    out = fused_cross_attention(x1, kv, w_q, proj_w, proj_b, H, scale,
                                block_q=block_q, block_kv=block_kv,
                                out_dtype=x1.dtype)
    return out


# ---------------------------------------------------------------------------
# Reference (pure jnp) for a sanity check
# ---------------------------------------------------------------------------

def reference_forward(params, x, x1):
    B, N, C = x.shape
    B1, N1, _ = x1.shape
    H = params["num_heads"]
    hd = C // H
    scale = hd ** (-0.5)
    qkv = (x @ params["qkv_w"]).reshape(B, N, 3, H, hd).transpose(2, 0, 3, 1, 4)
    qkv1 = (x1 @ params["qkv_w"]).reshape(B1, N1, 3, H, hd).transpose(2, 0, 3, 1, 4)
    q, k, v = qkv1[0], qkv[1], qkv[2]
    attn = jnp.einsum("bhqd,bhkd->bhqk", q, k) * scale
    attn = jax.nn.softmax(attn, axis=-1)
    o = jnp.einsum("bhqk,bhkd->bhqd", attn, v)
    o = o.transpose(0, 2, 1, 3).reshape(B1, N1, C)
    return o @ params["proj_w"] + params["proj_b"]


if __name__ == "__main__":
    key = jax.random.PRNGKey(0)
    kx, kx1, kp = jax.random.split(key, 3)

    B, N, N1, C, H = 2, 256, 256, 32, 4        # head_dim = 8
    x = jax.random.normal(kx, (B, N, C), jnp.float32)
    x1 = jax.random.normal(kx1, (B, N1, C), jnp.float32)
    params = init_cross_attention_params(kp, C, H)

    ref = reference_forward(params, x, x1)

    # f32 path, default blocks (single kv step: whole-KV-resident degenerate case).
    out = cross_attention_forward(params, x, x1)
    out = jax.block_until_ready(out)
    assert out.shape == (B, N1, C)
    assert jnp.allclose(out, ref, atol=2e-4, rtol=2e-4), "f32 mismatch vs reference"

    # f32 path, small blocks: exercises multiple M tiles against the resident weight,
    # multiple q tiles and the flash-style online-softmax carry across kv steps.
    out_small = cross_attention_forward(params, x, x1,
                                        block_m=128, block_q=128, block_kv=128)
    out_small = jax.block_until_ready(out_small)
    assert jnp.allclose(out_small, ref, atol=2e-4, rtol=2e-4), "tiled f32 mismatch"

    # bf16 MXU-operand path (f32 softmax / f32 accumulation) -- recommended on all
    # generations incl. v5e; validated with looser tolerance.
    out_bf16 = cross_attention_forward(params, x, x1, compute_dtype=jnp.bfloat16)
    out_bf16 = jax.block_until_ready(out_bf16)
    assert jnp.allclose(out_bf16.astype(jnp.float32), ref,
                        atol=5e-3, rtol=5e-3), "bf16 mismatch vs reference"

    print("KERNEL_OK")
</pallas_src>

<mosaic_0001>
module attributes {stable_mosaic.version = 11 : i64} {
  func.func @_linear_resident_kernel(%arg0: i32, %arg1: i32, %arg2: memref<512x32xf32, #tpu.memory_space<vmem>>, %arg3: memref<32x64xf32, #tpu.memory_space<vmem>>, %arg4: memref<512x64xf32, #tpu.memory_space<vmem>>) attributes {dimension_semantics = [#tpu.dimension_semantics<parallel>, #tpu.dimension_semantics<parallel>], iteration_bounds = array<i64: 1, 1>, scalar_prefetch = 0 : i64, scratch_operands = 0 : i64, tpu.core_type = #tpu.core_type<tc>, window_params = [{transform_indices = @transform_0, window_bounds = array<i64: 512, 32>}, {transform_indices = @transform_1, window_bounds = array<i64: 32, 64>}, {transform_indices = @transform_2, window_bounds = array<i64: 512, 64>}]} {
    %c0 = arith.constant 0 : index
    %c0_0 = arith.constant 0 : index
    %0 = vector.load %arg2[%c0, %c0_0] : memref<512x32xf32, #tpu.memory_space<vmem>>, vector<512x32xf32>
    %c0_1 = arith.constant 0 : index
    %c0_2 = arith.constant 0 : index
    %1 = vector.load %arg3[%c0_1, %c0_2] : memref<32x64xf32, #tpu.memory_space<vmem>>, vector<32x64xf32>
    %cst = arith.constant dense<0.000000e+00> : vector<512x64xf32>
    %2 = tpu.matmul %0, %1, %cst {dimension_numbers = #tpu.dot_dimension_numbers<[1], [0], [0], [1], [0, 0, 1, 1], [], []>} : vector<512x32xf32>, vector<32x64xf32>, vector<512x64xf32> -> vector<512x64xf32>
    %c0_3 = arith.constant 0 : index
    %c0_4 = arith.constant 0 : index
    %3 = vector.load %arg4[%c0_3, %c0_4] : memref<512x64xf32, #tpu.memory_space<vmem>>, vector<512x64xf32>
    tpu.vector_store %arg4[%c0_3, %c0_4], %2 {strides = array<i32>} : memref<512x64xf32, #tpu.memory_space<vmem>>, vector<512x64xf32>,
    return
  }
  func.func @transform_0(%arg0: i32, %arg1: i32) -> (i32, i32) {
    %c0_i32 = arith.constant 0 : i32
    %c0_i32_0 = arith.constant 0 : i32
    return %arg1, %c0_i32 : i32, i32
  }
  func.func @transform_1(%arg0: i32, %arg1: i32) -> (i32, i32) {
    %c0_i32 = arith.constant 0 : i32
    %c0_i32_0 = arith.constant 0 : i32
    return %c0_i32, %arg0 : i32, i32
  }
  func.func @transform_2(%arg0: i32, %arg1: i32) -> (i32, i32) {
    %c0_i32 = arith.constant 0 : i32
    return %arg1, %arg0 : i32, i32
  }
}

</mosaic_0001>

<llo_original>
// kernel: tpu_custom_call.1
$region0: #{tpu_custom_call.1}
  #allocation0 [shape = 'u32[]', space=smem, size = 0x4, offset = 0x4, fixed_abs, tag = 'smem constant byte address 0x4 - core index']
  #allocation1 [shape = 'u32[144,128]{1,0:T(1,128)}', space=vmem, size = 0x12000, scoped, tag = 'internal scratch']
  %s0 = inlined_call_operand.vmem [shape: f32[512,32], index: 0, kind: input, shape index: {}]
  %s1 = inlined_call_operand.vmem [shape: f32[32,64], index: 1, kind: input, shape index: {}]
  %s2 = inlined_call_operand.vmem [shape: f32[512,64], index: 2, kind: output, shape index: {}]
  %s3 = sld [smem:[#allocation0]]
  $region18: #{tpu_custom_call.1} parent=0
    _
  %s5 = ssub.s32 1, %s3
  %s6 = scalar_select 0, %s5, %s3
  // Predicated region
  $region2: #{tpu_custom_call.1} parent=0 // pred_check
    _
  $region3: #{tpu_custom_call.1} parent=0 // pred_check_branch
    %8 = sbr.rel (0) target = $region5
  $region4: #{tpu_custom_call.1} parent=0 // pred_region
    _
  $region5: #{tpu_custom_call.1} parent=0 // pred_fallthru
    _
  // Predicated region
  $region6: #{tpu_custom_call.1} parent=0 // pred_check
    _
  $region7: #{tpu_custom_call.1} parent=0 // pred_check_branch
    %10 = sbr.rel (0) target = $region9
  $region8: #{tpu_custom_call.1} parent=0 // pred_region
    _
  $region9: #{tpu_custom_call.1} parent=0 // pred_fallthru
    _
  %v11 = vld [vmem:[%s0] sm:$0xff]
  %v12 = vld [vmem:[%s0 + $0x8] sm:$0xff]
  %v13 = vld [vmem:[%s0 + $0x10] sm:$0xff]
  %v14 = vld [vmem:[%s0 + $0x18] sm:$0xff]
  %v15 = vld [vmem:[%s0 + $0x20] sm:$0xff]
  %v16 = vld [vmem:[%s0 + $0x28] sm:$0xff]
  %v17 = vld [vmem:[%s0 + $0x30] sm:$0xff]
  %v18 = vld [vmem:[%s0 + $0x38] sm:$0xff]
  %v19 = vld [vmem:[%s0 + $0x40] sm:$0xff]
  %v20 = vld [vmem:[%s0 + $0x48] sm:$0xff]
  %v21 = vld [vmem:[%s0 + $0x50] sm:$0xff]
  %v22 = vld [vmem:[%s0 + $0x58] sm:$0xff]
  %v23 = vld [vmem:[%s0 + $0x60] sm:$0xff]
  %v24 = vld [vmem:[%s0 + $0x68] sm:$0xff]
  %v25 = vld [vmem:[%s0 + $0x70] sm:$0xff]
  %v26 = vld [vmem:[%s0 + $0x78] sm:$0xff]
  %v27 = vld [vmem:[%s0 + $0x80] sm:$0xff]
  %v28 = vld [vmem:[%s0 + $0x88] sm:$0xff]
  %v29 = vld [vmem:[%s0 + $0x90] sm:$0xff]
  %v30 = vld [vmem:[%s0 + $0x98] sm:$0xff]
  %v31 = vld [vmem:[%s0 + $0xa0] sm:$0xff]
  %v32 = vld [vmem:[%s0 + $0xa8] sm:$0xff]
  %v33 = vld [vmem:[%s0 + $0xb0] sm:$0xff]
  %v34 = vld [vmem:[%s0 + $0xb8] sm:$0xff]
  %v35 = vld [vmem:[%s0 + $0xc0] sm:$0xff]
  %v36 = vld [vmem:[%s0 + $0xc8] sm:$0xff]
  %v37 = vld [vmem:[%s0 + $0xd0] sm:$0xff]
  %v38 = vld [vmem:[%s0 + $0xd8] sm:$0xff]
  %v39 = vld [vmem:[%s0 + $0xe0] sm:$0xff]
  %v40 = vld [vmem:[%s0 + $0xe8] sm:$0xff]
  %v41 = vld [vmem:[%s0 + $0xf0] sm:$0xff]
  %v42 = vld [vmem:[%s0 + $0xf8] sm:$0xff]
  %v43 = vld [vmem:[%s0 + $0x100] sm:$0xff]
  %v44 = vld [vmem:[%s0 + $0x108] sm:$0xff]
  %v45 = vld [vmem:[%s0 + $0x110] sm:$0xff]
  %v46 = vld [vmem:[%s0 + $0x118] sm:$0xff]
  %v47 = vld [vmem:[%s0 + $0x120] sm:$0xff]
  %v48 = vld [vmem:[%s0 + $0x128] sm:$0xff]
  %v49 = vld [vmem:[%s0 + $0x130] sm:$0xff]
  %v50 = vld [vmem:[%s0 + $0x138] sm:$0xff]
  %v51 = vld [vmem:[%s0 + $0x140] sm:$0xff]
  %v52 = vld [vmem:[%s0 + $0x148] sm:$0xff]
  %v53 = vld [vmem:[%s0 + $0x150] sm:$0xff]
  %v54 = vld [vmem:[%s0 + $0x158] sm:$0xff]
  %v55 = vld [vmem:[%s0 + $0x160] sm:$0xff]
  %v56 = vld [vmem:[%s0 + $0x168] sm:$0xff]
  %v57 = vld [vmem:[%s0 + $0x170] sm:$0xff]
  %v58 = vld [vmem:[%s0 + $0x178] sm:$0xff]
  %v59 = vld [vmem:[%s0 + $0x180] sm:$0xff]
  %v60 = vld [vmem:[%s0 + $0x188] sm:$0xff]
  %v61 = vld [vmem:[%s0 + $0x190] sm:$0xff]
  %v62 = vld [vmem:[%s0 + $0x198] sm:$0xff]
  %v63 = vld [vmem:[%s0 + $0x1a0] sm:$0xff]
  %v64 = vld [vmem:[%s0 + $0x1a8] sm:$0xff]
  %v65 = vld [vmem:[%s0 + $0x1b0] sm:$0xff]
  %v66 = vld [vmem:[%s0 + $0x1b8] sm:$0xff]
  %v67 = vld [vmem:[%s0 + $0x1c0] sm:$0xff]
  %v68 = vld [vmem:[%s0 + $0x1c8] sm:$0xff]
  %v69 = vld [vmem:[%s0 + $0x1d0] sm:$0xff]
  %v70 = vld [vmem:[%s0 + $0x1d8] sm:$0xff]
  %v71 = vld [vmem:[%s0 + $0x1e0] sm:$0xff]
  %v72 = vld [vmem:[%s0 + $0x1e8] sm:$0xff]
  %v73 = vld [vmem:[%s0 + $0x1f0] sm:$0xff]
  %v74 = vld [vmem:[%s0 + $0x1f8] sm:$0xff]
  %v75 = vld [vmem:[%s1] sm:$0xff]
  %v76 = vld [vmem:[%s1 + $0x8] sm:$0xff]
  %v77 = vld [vmem:[%s1 + $0x10] sm:$0xff]
  %v78 = vld [vmem:[%s1 + $0x18] sm:$0xff]
  %vm79 = vcmask 261120
  %v81 = vsel %vm79, %v11, 0
  %v84 = vsel %vm79, %v12, 0
  %v87 = vsel %vm79, %v13, 0
  %v90 = vsel %vm79, %v14, 0
  %v93 = vsel %vm79, %v15, 0
  %v96 = vsel %vm79, %v16, 0
  %v99 = vsel %vm79, %v17, 0
  %v102 = vsel %vm79, %v18, 0
  %v105 = vsel %vm79, %v19, 0
  %v108 = vsel %vm79, %v20, 0
  %v111 = vsel %vm79, %v21, 0
  %v114 = vsel %vm79, %v22, 0
  %v117 = vsel %vm79, %v23, 0
  %v120 = vsel %vm79, %v24, 0
  %v123 = vsel %vm79, %v25, 0
  %v126 = vsel %vm79, %v26, 0
  %v129 = vsel %vm79, %v27, 0
  %v132 = vsel %vm79, %v28, 0
  %v135 = vsel %vm79, %v29, 0
  %v138 = vsel %vm79, %v30, 0
  %v141 = vsel %vm79, %v31, 0
  %v144 = vsel %vm79, %v32, 0
  %v147 = vsel %vm79, %v33, 0
  %v150 = vsel %vm79, %v34, 0
  %v153 = vsel %vm79, %v35, 0
  %v156 = vsel %vm79, %v36, 0
  %v159 = vsel %vm79, %v37, 0
  %v162 = vsel %vm79, %v38, 0
  %v165 = vsel %vm79, %v39, 0
  %v168 = vsel %vm79, %v40, 0
  %v171 = vsel %vm79, %v41, 0
  %v174 = vsel %vm79, %v42, 0
  %v177 = vsel %vm79, %v43, 0
  %v180 = vsel %vm79, %v44, 0
  %v183 = vsel %vm79, %v45, 0
  %v186 = vsel %vm79, %v46, 0
  %v189 = vsel %vm79, %v47, 0
  %v192 = vsel %vm79, %v48, 0
  %v195 = vsel %vm79, %v49, 0
  %v198 = vsel %vm79, %v50, 0
  %v201 = vsel %vm79, %v51, 0
  %v204 = vsel %vm79, %v52, 0
  %v207 = vsel %vm79, %v53, 0
  %v210 = vsel %vm79, %v54, 0
  %v213 = vsel %vm79, %v55, 0
  %v216 = vsel %vm79, %v56, 0
  %v219 = vsel %vm79, %v57, 0
  %v222 = vsel %vm79, %v58, 0
  %v225 = vsel %vm79, %v59, 0
  %v228 = vsel %vm79, %v60, 0
  %v231 = vsel %vm79, %v61, 0
  %v234 = vsel %vm79, %v62, 0
  %v237 = vsel %vm79, %v63, 0
  %v240 = vsel %vm79, %v64, 0
  %v243 = vsel %vm79, %v65, 0
  %v246 = vsel %vm79, %v66, 0
  %v249 = vsel %vm79, %v67, 0
  %v252 = vsel %vm79, %v68, 0
  %v255 = vsel %vm79, %v69, 0
  %v258 = vsel %vm79, %v70, 0
  %v261 = vsel %vm79, %v71, 0
  %v264 = vsel %vm79, %v72, 0
  %v267 = vsel %vm79, %v73, 0
  %v270 = vsel %vm79, %v74, 0
  %272 = vmatprep.subr.mxu0 0.0
  %273 = vmatpush1.msra.mxu0 %v75
  %274 = vmatprep.subr.mxu0 0.0
  %275 = vmatpush1.msra.mxu0 %v76
  %276 = vmatprep.subr.mxu0 0.0
  %277 = vmatpush1.msra.mxu0 %v77
  %278 = vmatprep.subr.mxu0 0.0
  %279 = vmatpush1.msra.mxu0 %v78
  %280 = vmatprep.subr.mxu0 0.0
  %281 = vmatpush1.msra.mxu0 0.0
  %282 = vmatprep.subr.mxu0 0.0
  %283 = vmatpush1.msra.mxu0 0.0
  %284 = vmatprep.subr.mxu0 0.0
  %285 = vmatpush1.msra.mxu0 0.0
  %286 = vmatprep.subr.mxu0 0.0
  %287 = vmatpush1.msra.mxu0 0.0
  %288 = vmatprep.subr.mxu0 0.0
  %289 = vmatpush1.msra.mxu0 0.0
  %290 = vmatprep.subr.mxu0 0.0
  %291 = vmatpush1.msra.mxu0 0.0
  %292 = vmatprep.subr.mxu0 0.0
  %293 = vmatpush1.msra.mxu0 0.0
  %294 = vmatprep.subr.mxu0 0.0
  %295 = vmatpush1.msra.mxu0 0.0
  %296 = vmatprep.subr.mxu0 0.0
  %297 = vmatpush1.msra.mxu0 0.0
  %298 = vmatprep.subr.mxu0 0.0
  %299 = vmatpush1.msra.mxu0 0.0
  %300 = vmatprep.subr.mxu0 0.0
  %301 = vmatpush1.msra.mxu0 0.0
  %302 = vmatprep.subr.mxu0 0.0
  %303 = vmatpush1.msra.mxu0 0.0
  %304 = vmatprep.subr.mxu0 0.0
  %305 = vmatpush1.msra.mxu0 0.0
  %306 = vmatprep.subr.mxu0 0.0
  %307 = vmatpush1.msra.mxu0 0.0
  %308 = vmatprep.subr.mxu0 0.0
  %309 = vmatpush1.msra.mxu0 0.0
  %310 = vmatprep.subr.mxu0 0.0
  %311 = vmatpush1.msra.mxu0 0.0
  %312 = vmatprep.subr.mxu0 0.0
  %313 = vmatpush1.msra.mxu0 0.0
  %314 = vmatprep.subr.mxu0 0.0
  %315 = vmatpush1.msra.mxu0 0.0
  %316 = vmatprep.subr.mxu0 0.0
  %317 = vmatpush1.msra.mxu0 0.0
  %318 = vmatprep.subr.mxu0 0.0
  %319 = vmatpush1.msra.mxu0 0.0
  %320 = vmatprep.subr.mxu0 0.0
  %321 = vmatpush1.msra.mxu0 0.0
  %322 = vmatprep.subr.mxu0 0.0
  %323 = vmatpush1.msra.mxu0 0.0
  %324 = vmatprep.subr.mxu0 0.0
  %325 = vmatpush1.msra.mxu0 0.0
  %326 = vmatprep.subr.mxu0 0.0
  %327 = vmatpush1.msra.mxu0 0.0
  %328 = vmatprep.subr.mxu0 0.0
  %329 = vmatpush1.msra.mxu0 0.0
  %330 = vmatprep.subr.mxu0 0.0
  %331 = vmatpush1.msra.mxu0 0.0
  %332 = vmatprep.subr.mxu0 0.0
  %333 = vmatpush1.msra.mxu0 0.0
  %334 = vmatprep.subr.mxu0 0.0
  %335 = vmatpush1.msra.mxu0 0.0
  %336 = vmatprep.mubr.f32.mxu0 0.0
  %337 = vmatmul.mubr.f32.gmra.mrb[0].mxu0 %v81
  %v338 = vpop.f32.mrb[0].mxu0
  %v339 = vadd.f32 0.0, %v338
  %v340 = vpop.f32.mrb[0].mxu0
  %341 = vmatprep.mubr.f32.mxu0 0.0
  %342 = vmatmul.mubr.f32.gmra.mrb[0].mxu0 %v84
  %v343 = vpop.f32.mrb[0].mxu0
  %v344 = vadd.f32 0.0, %v343
  %v345 = vpop.f32.mrb[0].mxu0
  %346 = vmatprep.mubr.f32.mxu0 0.0
  %347 = vmatmul.mubr.f32.gmra.mrb[0].mxu0 %v87
  %v348 = vpop.f32.mrb[0].mxu0
  %v349 = vadd.f32 0.0, %v348
  %v350 = vpop.f32.mrb[0].mxu0
  %351 = vmatprep.mubr.f32.mxu0 0.0
  %352 = vmatmul.mubr.f32.gmra.mrb[0].mxu0 %v90
  %v353 = vpop.f32.mrb[0].mxu0
  %v354 = vadd.f32 0.0, %v353
  %v355 = vpop.f32.mrb[0].mxu0
  %356 = vmatprep.mubr.f32.mxu0 0.0
  %357 = vmatmul.mubr.f32.gmra.mrb[0].mxu0 %v93
  %v358 = vpop.f32.mrb[0].mxu0
  %v359 = vadd.f32 0.0, %v358
  %v360 = vpop.f32.mrb[0].mxu0
  %361 = vmatprep.mubr.f32.mxu0 0.0
  %362 = vmatmul.mubr.f32.gmra.mrb[0].mxu0 %v96
  %v363 = vpop.f32.mrb[0].mxu0
  %v364 = vadd.f32 0.0, %v363
  %v365 = vpop.f32.mrb[0].mxu0
  %366 = vmatprep.mubr.f32.mxu0 0.0
  %367 = vmatmul.mubr.f32.gmra.mrb[0].mxu0 %v99
  %v368 = vpop.f32.mrb[0].mxu0
  %v369 = vadd.f32 0.0, %v368
  %v370 = vpop.f32.mrb[0].mxu0
  %371 = vmatprep.mubr.f32.mxu0 0.0
  %372 = vmatmul.mubr.f32.gmra.mrb[0].mxu0 %v102
  %v373 = vpop.f32.mrb[0].mxu0
  %v374 = vadd.f32 0.0, %v373
  %v375 = vpop.f32.mrb[0].mxu0
  %376 = vmatprep.mubr.f32.mxu0 0.0
  %377 = vmatmul.mubr.f32.gmra.mrb[0].mxu0 %v105
  %v378 = vpop.f32.mrb[0].mxu0
  %v379 = vadd.f32 0.0, %v378
  %v380 = vpop.f32.mrb[0].mxu0
  %381 = vmatprep.mubr.f32.mxu0 0.0
  %382 = vmatmul.mubr.f32.gmra.mrb[0].mxu0 %v108
  %v383 = vpop.f32.mrb[0].mxu0
  %v384 = vadd.f32 0.0, %v383
  %v385 = vpop.f32.mrb[0].mxu0
  %386 = vmatprep.mubr.f32.mxu0 0.0
  %387 = vmatmul.mubr.f32.gmra.mrb[0].mxu0 %v111
  %v388 = vpop.f32.mrb[0].mxu0
  %v389 = vadd.f32 0.0, %v388
  %v390 = vpop.f32.mrb[0].mxu0
  %391 = vmatprep.mubr.f32.mxu0 0.0
  %392 = vmatmul.mubr.f32.gmra.mrb[0].mxu0 %v114
  %v393 = vpop.f32.mrb[0].mxu0
  %v394 = vadd.f32 0.0, %v393
  %v395 = vpop.f32.mrb[0].mxu0
  %396 = vmatprep.mubr.f32.mxu0 0.0
  %397 = vmatmul.mubr.f32.gmra.mrb[0].mxu0 %v117
  %v398 = vpop.f32.mrb[0].mxu0
  %v399 = vadd.f32 0.0, %v398
  %v400 = vpop.f32.mrb[0].mxu0
  %401 = vmatprep.mubr.f32.mxu0 0.0
  %402 = vmatmul.mubr.f32.gmra.mrb[0].mxu0 %v120
  %v403 = vpop.f32.mrb[0].mxu0
  %v404 = vadd.f32 0.0, %v403
  %v405 = vpop.f32.mrb[0].mxu0
  %406 = vmatprep.mubr.f32.mxu0 0.0
  %407 = vmatmul.mubr.f32.gmra.mrb[0].mxu0 %v123
  %v408 = vpop.f32.mrb[0].mxu0
  %v409 = vadd.f32 0.0, %v408
  %v410 = vpop.f32.mrb[0].mxu0
  %411 = vmatprep.mubr.f32.mxu0 0.0
  %412 = vmatmul.mubr.f32.gmra.mrb[0].mxu0 %v126
  %v413 = vpop.f32.mrb[0].mxu0
  %v414 = vadd.f32 0.0, %v413
  %v415 = vpop.f32.mrb[0].mxu0
  %416 = vmatprep.mubr.f32.mxu0 0.0
  %417 = vmatmul.mubr.f32.gmra.mrb[0].mxu0 %v129
  %v418 = vpop.f32.mrb[0].mxu0
  %v419 = vadd.f32 0.0, %v418
  %v420 = vpop.f32.mrb[0].mxu0
  %421 = vmatprep.mubr.f32.mxu0 0.0
  %422 = vmatmul.mubr.f32.gmra.mrb[0].mxu0 %v132
  %v423 = vpop.f32.mrb[0].mxu0
  %v424 = vadd.f32 0.0, %v423
  %v425 = vpop.f32.mrb[0].mxu0
  %426 = vmatprep.mubr.f32.mxu0 0.0
  %427 = vmatmul.mubr.f32.gmra.mrb[0].mxu0 %v135
  %v428 = vpop.f32.mrb[0].mxu0
  %v429 = vadd.f32 0.0, %v428
  %v430 = vpop.f32.mrb[0].mxu0
  %431 = vmatprep.mubr.f32.mxu0 0.0
  %432 = vmatmul.mubr.f32.gmra.mrb[0].mxu0 %v138
  %v433 = vpop.f32.mrb[0].mxu0
  %v434 = vadd.f32 0.0, %v433
  %v435 = vpop.f32.mrb[0].mxu0
  %436 = vmatprep.mubr.f32.mxu0 0.0
  %437 = vmatmul.mubr.f32.gmra.mrb[0].mxu0 %v141
  %v438 = vpop.f32.mrb[0].mxu0
  %v439 = vadd.f32 0.0, %v438
  %v440 = vpop.f32.mrb[0].mxu0
  %441 = vmatprep.mubr.f32.mxu0 0.0
  %442 = vmatmul.mubr.f32.gmra.mrb[0].mxu0 %v144
  %v443 = vpop.f32.mrb[0].mxu0
  %v444 = vadd.f32 0.0, %v443
  %v445 = vpop.f32.mrb[0].mxu0
  %446 = vmatprep.mubr.f32.mxu0 0.0
  %447 = vmatmul.mubr.f32.gmra.mrb[0].mxu0 %v147
  %v448 = vpop.f32.mrb[0].mxu0
  %v449 = vadd.f32 0.0, %v448
  %v450 = vpop.f32.mrb[0].mxu0
  %451 = vmatprep.mubr.f32.mxu0 0.0
  %452 = vmatmul.mubr.f32.gmra.mrb[0].mxu0 %v150
  %v453 = vpop.f32.mrb[0].mxu0
  %v454 = vadd.f32 0.0, %v453
  %v455 = vpop.f32.mrb[0].mxu0
  %456 = vmatprep.mubr.f32.mxu0 0.0
  %457 = vmatmul.mubr.f32.gmra.mrb[0].mxu0 %v153
  %v458 = vpop.f32.mrb[0].mxu0
  %v459 = vadd.f32 0.0, %v458
  %v460 = vpop.f32.mrb[0].mxu0
  %461 = vmatprep.mubr.f32.mxu0 0.0
  %462 = vmatmul.mubr.f32.gmra.mrb[0].mxu0 %v156
  %v463 = vpop.f32.mrb[0].mxu0
  %v464 = vadd.f32 0.0, %v463
  %v465 = vpop.f32.mrb[0].mxu0
  %466 = vmatprep.mubr.f32.mxu0 0.0
  %467 = vmatmul.mubr.f32.gmra.mrb[0].mxu0 %v159
  %v468 = vpop.f32.mrb[0].mxu0
  %v469 = vadd.f32 0.0, %v468
  %v470 = vpop.f32.mrb[0].mxu0
  %471 = vmatprep.mubr.f32.mxu0 0.0
  %472 = vmatmul.mubr.f32.gmra.mrb[0].mxu0 %v162
  %v473 = vpop.f32.mrb[0].mxu0
  %v474 = vadd.f32 0.0, %v473
  %v475 = vpop.f32.mrb[0].mxu0
  %476 = vmatprep.mubr.f32.mxu0 0.0
  %477 = vmatmul.mubr.f32.gmra.mrb[0].mxu0 %v165
  %v478 = vpop.f32.mrb[0].mxu0
  %v479 = vadd.f32 0.0, %v478
  %v480 = vpop.f32.mrb[0].mxu0
  %481 = vmatprep.mubr.f32.mxu0 0.0
  %482 = vmatmul.mubr.f32.gmra.mrb[0].mxu0 %v168
  %v483 = vpop.f32.mrb[0].mxu0
  %v484 = vadd.f32 0.0, %v483
  %v485 = vpop.f32.mrb[0].mxu0
  %486 = vmatprep.mubr.f32.mxu0 0.0
  %487 = vmatmul.mubr.f32.gmra.mrb[0].mxu0 %v171
  %v488 = vpop.f32.mrb[0].mxu0
  %v489 = vadd.f32 0.0, %v488
  %v490 = vpop.f32.mrb[0].mxu0
  %491 = vmatprep.mubr.f32.mxu0 0.0
  %492 = vmatmul.mubr.f32.gmra.mrb[0].mxu0 %v174
  %v493 = vpop.f32.mrb[0].mxu0
  %v494 = vadd.f32 0.0, %v493
  %v495 = vpop.f32.mrb[0].mxu0
  %496 = vmatprep.mubr.f32.mxu0 0.0
  %497 = vmatmul.mubr.f32.gmra.mrb[0].mxu0 %v177
  %v498 = vpop.f32.mrb[0].mxu0
  %v499 = vadd.f32 0.0, %v498
  %v500 = vpop.f32.mrb[0].mxu0
  %501 = vmatprep.mubr.f32.mxu0 0.0
  %502 = vmatmul.mubr.f32.gmra.mrb[0].mxu0 %v180
  %v503 = vpop.f32.mrb[0].mxu0
  %v504 = vadd.f32 0.0, %v503
  %v505 = vpop.f32.mrb[0].mxu0
  %506 = vmatprep.mubr.f32.mxu0 0.0
  %507 = vmatmul.mubr.f32.gmra.mrb[0].mxu0 %v183
  %v508 = vpop.f32.mrb[0].mxu0
  %v509 = vadd.f32 0.0, %v508
  %v510 = vpop.f32.mrb[0].mxu0
  %511 = vmatprep.mubr.f32.mxu0 0.0
  %512 = vmatmul.mubr.f32.gmra.mrb[0].mxu0 %v186
  %v513 = vpop.f32.mrb[0].mxu0
  %v514 = vadd.f32 0.0, %v513
  %v515 = vpop.f32.mrb[0].mxu0
  %516 = vmatprep.mubr.f32.mxu0 0.0
  %517 = vmatmul.mubr.f32.gmra.mrb[0].mxu0 %v189
  %v518 = vpop.f32.mrb[0].mxu0
  %v519 = vadd.f32 0.0, %v518
  %v520 = vpop.f32.mrb[0].mxu0
  %521 = vmatprep.mubr.f32.mxu0 0.0
  %522 = vmatmul.mubr.f32.gmra.mrb[0].mxu0 %v192
  %v523 = vpop.f32.mrb[0].mxu0
  %v524 = vadd.f32 0.0, %v523
  %v525 = vpop.f32.mrb[0].mxu0
  %526 = vmatprep.mubr.f32.mxu0 0.0
  %527 = vmatmul.mubr.f32.gmra.mrb[0].mxu0 %v195
  %v528 = vpop.f32.mrb[0].mxu0
  %v529 = vadd.f32 0.0, %v528
  %v530 = vpop.f32.mrb[0].mxu0
  %531 = vmatprep.mubr.f32.mxu0 0.0
  %532 = vmatmul.mubr.f32.gmra.mrb[0].mxu0 %v198
  %v533 = vpop.f32.mrb[0].mxu0
  %v534 = vadd.f32 0.0, %v533
  %v535 = vpop.f32.mrb[0].mxu0
  %536 = vmatprep.mubr.f32.mxu0 0.0
  %537 = vmatmul.mubr.f32.gmra.mrb[0].mxu0 %v201
  %v538 = vpop.f32.mrb[0].mxu0
  %v539 = vadd.f32 0.0, %v538
  %v540 = vpop.f32.mrb[0].mxu0
  %541 = vmatprep.mubr.f32.mxu0 0.0
  %542 = vmatmul.mubr.f32.gmra.mrb[0].mxu0 %v204
  %v543 = vpop.f32.mrb[0].mxu0
  %v544 = vadd.f32 0.0, %v543
  %v545 = vpop.f32.mrb[0].mxu0
  %546 = vmatprep.mubr.f32.mxu0 0.0
  %547 = vmatmul.mubr.f32.gmra.mrb[0].mxu0 %v207
  %v548 = vpop.f32.mrb[0].mxu0
  %v549 = vadd.f32 0.0, %v548
  %v550 = vpop.f32.mrb[0].mxu0
  %551 = vmatprep.mubr.f32.mxu0 0.0
  %552 = vmatmul.mubr.f32.gmra.mrb[0].mxu0 %v210
  %v553 = vpop.f32.mrb[0].mxu0
  %v554 = vadd.f32 0.0, %v553
  %v555 = vpop.f32.mrb[0].mxu0
  %556 = vmatprep.mubr.f32.mxu0 0.0
  %557 = vmatmul.mubr.f32.gmra.mrb[0].mxu0 %v213
  %v558 = vpop.f32.mrb[0].mxu0
  %v559 = vadd.f32 0.0, %v558
  %v560 = vpop.f32.mrb[0].mxu0
  %561 = vmatprep.mubr.f32.mxu0 0.0
  %562 = vmatmul.mubr.f32.gmra.mrb[0].mxu0 %v216
  %v563 = vpop.f32.mrb[0].mxu0
  %v564 = vadd.f32 0.0, %v563
  %v565 = vpop.f32.mrb[0].mxu0
  %566 = vmatprep.mubr.f32.mxu0 0.0
  %567 = vmatmul.mubr.f32.gmra.mrb[0].mxu0 %v219
  %v568 = vpop.f32.mrb[0].mxu0
  %v569 = vadd.f32 0.0, %v568
  %v570 = vpop.f32.mrb[0].mxu0
  %571 = vmatprep.mubr.f32.mxu0 0.0
  %572 = vmatmul.mubr.f32.gmra.mrb[0].mxu0 %v222
  %v573 = vpop.f32.mrb[0].mxu0
  %v574 = vadd.f32 0.0, %v573
  %v575 = vpop.f32.mrb[0].mxu0
  %576 = vmatprep.mubr.f32.mxu0 0.0
  %577 = vmatmul.mubr.f32.gmra.mrb[0].mxu0 %v225
  %v578 = vpop.f32.mrb[0].mxu0
  %v579 = vadd.f32 0.0, %v578
  %v580 = vpop.f32.mrb[0].mxu0
  %581 = vmatprep.mubr.f32.mxu0 0.0
  %582 = vmatmul.mubr.f32.gmra.mrb[0].mxu0 %v228
  %v583 = vpop.f32.mrb[0].mxu0
  %v584 = vadd.f32 0.0, %v583
  %v585 = vpop.f32.mrb[0].mxu0
  %586 = vmatprep.mubr.f32.mxu0 0.0
  %587 = vmatmul.mubr.f32.gmra.mrb[0].mxu0 %v231
  %v588 = vpop.f32.mrb[0].mxu0
  %v589 = vadd.f32 0.0, %v588
  %v590 = vpop.f32.mrb[0].mxu0
  %591 = vmatprep.mubr.f32.mxu0 0.0
  %592 = vmatmul.mubr.f32.gmra.mrb[0].mxu0 %v234
  %v593 = vpop.f32.mrb[0].mxu0
  %v594 = vadd.f32 0.0, %v593
  %v595 = vpop.f32.mrb[0].mxu0
  %596 = vmatprep.mubr.f32.mxu0 0.0
  %597 = vmatmul.mubr.f32.gmra.mrb[0].mxu0 %v237
  %v598 = vpop.f32.mrb[0].mxu0
  %v599 = vadd.f32 0.0, %v598
  %v600 = vpop.f32.mrb[0].mxu0
  %601 = vmatprep.mubr.f32.mxu0 0.0
  %602 = vmatmul.mubr.f32.gmra.mrb[0].mxu0 %v240
  %v603 = vpop.f32.mrb[0].mxu0
  %v604 = vadd.f32 0.0, %v603
  %v605 = vpop.f32.mrb[0].mxu0
  %606 = vmatprep.mubr.f32.mxu0 0.0
  %607 = vmatmul.mubr.f32.gmra.mrb[0].mxu0 %v243
  %v608 = vpop.f32.mrb[0].mxu0
  %v609 = vadd.f32 0.0, %v608
  %v610 = vpop.f32.mrb[0].mxu0
  %611 = vmatprep.mubr.f32.mxu0 0.0
  %612 = vmatmul.mubr.f32.gmra.mrb[0].mxu0 %v246
  %v613 = vpop.f32.mrb[0].mxu0
  %v614 = vadd.f32 0.0, %v613
  %v615 = vpop.f32.mrb[0].mxu0
  %616 = vmatprep.mubr.f32.mxu0 0.0
  %617 = vmatmul.mubr.f32.gmra.mrb[0].mxu0 %v249
  %v618 = vpop.f32.mrb[0].mxu0
  %v619 = vadd.f32 0.0, %v618
  %v620 = vpop.f32.mrb[0].mxu0
  %621 = vmatprep.mubr.f32.mxu0 0.0
  %622 = vmatmul.mubr.f32.gmra.mrb[0].mxu0 %v252
  %v623 = vpop.f32.mrb[0].mxu0
  %v624 = vadd.f32 0.0, %v623
  %v625 = vpop.f32.mrb[0].mxu0
  %626 = vmatprep.mubr.f32.mxu0 0.0
  %627 = vmatmul.mubr.f32.gmra.mrb[0].mxu0 %v255
  %v628 = vpop.f32.mrb[0].mxu0
  %v629 = vadd.f32 0.0, %v628
  %v630 = vpop.f32.mrb[0].mxu0
  %631 = vmatprep.mubr.f32.mxu0 0.0
  %632 = vmatmul.mubr.f32.gmra.mrb[0].mxu0 %v258
  %v633 = vpop.f32.mrb[0].mxu0
  %v634 = vadd.f32 0.0, %v633
  %v635 = vpop.f32.mrb[0].mxu0
  %636 = vmatprep.mubr.f32.mxu0 0.0
  %637 = vmatmul.mubr.f32.gmra.mrb[0].mxu0 %v261
  %v638 = vpop.f32.mrb[0].mxu0
  %v639 = vadd.f32 0.0, %v638
  %v640 = vpop.f32.mrb[0].mxu0
  %641 = vmatprep.mubr.f32.mxu0 0.0
  %642 = vmatmul.mubr.f32.gmra.mrb[0].mxu0 %v264
  %v643 = vpop.f32.mrb[0].mxu0
  %v644 = vadd.f32 0.0, %v643
  %v645 = vpop.f32.mrb[0].mxu0
  %646 = vmatprep.mubr.f32.mxu0 0.0
  %647 = vmatmul.mubr.f32.gmra.mrb[0].mxu0 %v267
  %v648 = vpop.f32.mrb[0].mxu0
  %v649 = vadd.f32 0.0, %v648
  %v650 = vpop.f32.mrb[0].mxu0
  %651 = vmatprep.mubr.f32.mxu0 0.0
  %652 = vmatmul.mubr.f32.gmra.mrb[0].mxu0 %v270
  %v653 = vpop.f32.mrb[0].mxu0
  %v654 = vadd.f32 0.0, %v653
  %v655 = vpop.f32.mrb[0].mxu0
  %656 = vdwg.mxu0
  %vm657 = vcmask 523264
  %658 = vst.msk [vmem:[%s2] sm:$0xff] %vm657, %v339
  %659 = vst.msk [vmem:[%s2 + $0x8] sm:$0xff] %vm657, %v344
  %660 = vst.msk [vmem:[%s2 + $0x10] sm:$0xff] %vm657, %v349
  %661 = vst.msk [vmem:[%s2 + $0x18] sm:$0xff] %vm657, %v354
  %662 = vst.msk [vmem:[%s2 + $0x20] sm:$0xff] %vm657, %v359
  %663 = vst.msk [vmem:[%s2 + $0x28] sm:$0xff] %vm657, %v364
  %664 = vst.msk [vmem:[%s2 + $0x30] sm:$0xff] %vm657, %v369
  %665 = vst.msk [vmem:[%s2 + $0x38] sm:$0xff] %vm657, %v374
  %666 = vst.msk [vmem:[%s2 + $0x40] sm:$0xff] %vm657, %v379
  %667 = vst.msk [vmem:[%s2 + $0x48] sm:$0xff] %vm657, %v384
  %668 = vst.msk [vmem:[%s2 + $0x50] sm:$0xff] %vm657, %v389
  %669 = vst.msk [vmem:[%s2 + $0x58] sm:$0xff] %vm657, %v394
  %670 = vst.msk [vmem:[%s2 + $0x60] sm:$0xff] %vm657, %v399
  %671 = vst.msk [vmem:[%s2 + $0x68] sm:$0xff] %vm657, %v404
  %672 = vst.msk [vmem:[%s2 + $0x70] sm:$0xff] %vm657, %v409
  %673 = vst.msk [vmem:[%s2 + $0x78] sm:$0xff] %vm657, %v414
  %674 = vst.msk [vmem:[%s2 + $0x80] sm:$0xff] %vm657, %v419
  %675 = vst.msk [vmem:[%s2 + $0x88] sm:$0xff] %vm657, %v424
  %676 = vst.msk [vmem:[%s2 + $0x90] sm:$0xff] %vm657, %v429
  %677 = vst.msk [vmem:[%s2 + $0x98] sm:$0xff] %vm657, %v434
  %678 = vst.msk [vmem:[%s2 + $0xa0] sm:$0xff] %vm657, %v439
  %679 = vst.msk [vmem:[%s2 + $0xa8] sm:$0xff] %vm657, %v444
  %680 = vst.msk [vmem:[%s2 + $0xb0] sm:$0xff] %vm657, %v449
  %681 = vst.msk [vmem:[%s2 + $0xb8] sm:$0xff] %vm657, %v454
  %682 = vst.msk [vmem:[%s2 + $0xc0] sm:$0xff] %vm657, %v459
  %683 = vst.msk [vmem:[%s2 + $0xc8] sm:$0xff] %vm657, %v464
  %684 = vst.msk [vmem:[%s2 + $0xd0] sm:$0xff] %vm657, %v469
  %685 = vst.msk [vmem:[%s2 + $0xd8] sm:$0xff] %vm657, %v474
  %686 = vst.msk [vmem:[%s2 + $0xe0] sm:$0xff] %vm657, %v479
  %687 = vst.msk [vmem:[%s2 + $0xe8] sm:$0xff] %vm657, %v484
  %688 = vst.msk [vmem:[%s2 + $0xf0] sm:$0xff] %vm657, %v489
  %689 = vst.msk [vmem:[%s2 + $0xf8] sm:$0xff] %vm657, %v494
  %690 = vst.msk [vmem:[%s2 + $0x100] sm:$0xff] %vm657, %v499
  %691 = vst.msk [vmem:[%s2 + $0x108] sm:$0xff] %vm657, %v504
  %692 = vst.msk [vmem:[%s2 + $0x110] sm:$0xff] %vm657, %v509
  %693 = vst.msk [vmem:[%s2 + $0x118] sm:$0xff] %vm657, %v514
  %694 = vst.msk [vmem:[%s2 + $0x120] sm:$0xff] %vm657, %v519
  %695 = vst.msk [vmem:[%s2 + $0x128] sm:$0xff] %vm657, %v524
  %696 = vst.msk [vmem:[%s2 + $0x130] sm:$0xff] %vm657, %v529
  %697 = vst.msk [vmem:[%s2 + $0x138] sm:$0xff] %vm657, %v534
  %698 = vst.msk [vmem:[%s2 + $0x140] sm:$0xff] %vm657, %v539
  %699 = vst.msk [vmem:[%s2 + $0x148] sm:$0xff] %vm657, %v544
  %700 = vst.msk [vmem:[%s2 + $0x150] sm:$0xff] %vm657, %v549
  %701 = vst.msk [vmem:[%s2 + $0x158] sm:$0xff] %vm657, %v554
  %702 = vst.msk [vmem:[%s2 + $0x160] sm:$0xff] %vm657, %v559
  %703 = vst.msk [vmem:[%s2 + $0x168] sm:$0xff] %vm657, %v564
  %704 = vst.msk [vmem:[%s2 + $0x170] sm:$0xff] %vm657, %v569
  %705 = vst.msk [vmem:[%s2 + $0x178] sm:$0xff] %vm657, %v574
  %706 = vst.msk [vmem:[%s2 + $0x180] sm:$0xff] %vm657, %v579
  %707 = vst.msk [vmem:[%s2 + $0x188] sm:$0xff] %vm657, %v584
  %708 = vst.msk [vmem:[%s2 + $0x190] sm:$0xff] %vm657, %v589
  %709 = vst.msk [vmem:[%s2 + $0x198] sm:$0xff] %vm657, %v594
  %710 = vst.msk [vmem:[%s2 + $0x1a0] sm:$0xff] %vm657, %v599
  %711 = vst.msk [vmem:[%s2 + $0x1a8] sm:$0xff] %vm657, %v604
  %712 = vst.msk [vmem:[%s2 + $0x1b0] sm:$0xff] %vm657, %v609
  %713 = vst.msk [vmem:[%s2 + $0x1b8] sm:$0xff] %vm657, %v614
  %714 = vst.msk [vmem:[%s2 + $0x1c0] sm:$0xff] %vm657, %v619
  %715 = vst.msk [vmem:[%s2 + $0x1c8] sm:$0xff] %vm657, %v624
  %716 = vst.msk [vmem:[%s2 + $0x1d0] sm:$0xff] %vm657, %v629
  %717 = vst.msk [vmem:[%s2 + $0x1d8] sm:$0xff] %vm657, %v634
  %718 = vst.msk [vmem:[%s2 + $0x1e0] sm:$0xff] %vm657, %v639
  %719 = vst.msk [vmem:[%s2 + $0x1e8] sm:$0xff] %vm657, %v644
  %720 = vst.msk [vmem:[%s2 + $0x1f0] sm:$0xff] %vm657, %v649
  %721 = vst.msk [vmem:[%s2 + $0x1f8] sm:$0xff] %vm657, %v654
  // Predicated region
  $region10: #{tpu_custom_call.1} parent=0 // pred_check
    _
  $region11: #{tpu_custom_call.1} parent=0 // pred_check_branch
    %723 = sbr.rel (0) target = $region13
  $region12: #{tpu_custom_call.1} parent=0 // pred_region
    _
  $region13: #{tpu_custom_call.1} parent=0 // pred_fallthru
    _
  // Predicated region
  $region14: #{tpu_custom_call.1} parent=0 // pred_check
    _
  $region15: #{tpu_custom_call.1} parent=0 // pred_check_branch
    %725 = sbr.rel (0) target = $region17
  $region16: #{tpu_custom_call.1} parent=0 // pred_region
    _
  $region17: #{tpu_custom_call.1} parent=0 // pred_fallthru
    _

</llo_original>
